<compile_context>
chip_gen: v7x
topology: tpu7x:2x2x1
jax: 0.10.0
libtpu: 0.0.40
codegen_flags: <defaults>
</compile_context>

<pallas_src>
import numpy as np
import jax
import jax.numpy as jnp
from jax.experimental import pallas as pl
from jax.experimental.pallas import tpu as pltpu


def _round_up(x, m):
    return ((x + m - 1) // m) * m


def _cdiv(a, b):
    return -(-a // b)


def _mlp_kernel(x_ref, w1_ref, b1_ref, w2_ref, b2_ref, w3_ref, b3_ref, o_ref):
    # Layer 1: Linear + ReLU (+ Dropout identity in eval mode)
    h = jnp.dot(x_ref[...], w1_ref[...], preferred_element_type=jnp.float32)
    h = jnp.maximum(h + b1_ref[...], 0.0)
    # TODO(synk): nn.Dropout(p=0.1) is identity in eval mode; training-mode
    # stochastic dropout would use pltpu.prng_seed / pltpu.prng_random_bits.

    # Layer 2: Linear + ReLU (+ Dropout identity)
    h = jnp.dot(h, w2_ref[...], preferred_element_type=jnp.float32)
    h = jnp.maximum(h + b2_ref[...], 0.0)

    # Output layer: Linear (no activation), stored at the true d_out width.
    out = jnp.dot(h, w3_ref[...], preferred_element_type=jnp.float32)
    o_ref[...] = (out + b3_ref[...]).astype(o_ref.dtype)


def low_dim_core_forward(x, params, output_shape, batch_tile=8192,
                         input_buffers=3, use_bf16=False):
    """
    Args:
        x: [B, *input_shape] float32
        params: dict with w1,b1,w2,b2,w3,b3 (weights stored [in, out],
                biases stored [1, out]) -- unpadded, as in the PyTorch module.
        output_shape: tuple, output shape excluding batch dim
        batch_tile: max rows per grid step (sweepable)
        input_buffers: pipelining depth for the activation input DMA
        use_bf16: cast matmul operands to bf16 (bandwidth/MXU win, small numerics delta)
    Returns:
        [B, *output_shape] float32
    """
    B = x.shape[0]
    x_flat = x.reshape(B, -1).astype(jnp.float32)
    d_in = x_flat.shape[1]
    d_out = int(np.prod(output_shape))
    LANE = 128

    # --- hidden-dim lane padding (once; weights stay KiB-scale, resident in VMEM).
    # Padded columns/rows are zeros -> ReLU(0+0)=0 -> exact same numerics.
    h1 = params["w1"].shape[1]
    h2 = params["w2"].shape[1]
    h1p, h2p = _round_up(h1, LANE), _round_up(h2, LANE)
    w1 = jnp.pad(params["w1"], ((0, 0), (0, h1p - h1)))
    b1 = jnp.pad(params["b1"], ((0, 0), (0, h1p - h1)))
    w2 = jnp.pad(params["w2"], ((0, h1p - h1), (0, h2p - h2)))
    b2 = jnp.pad(params["b2"], ((0, 0), (0, h2p - h2)))
    w3 = jnp.pad(params["w3"], ((0, h2p - h2), (0, 0)))
    b3 = params["b3"]

    # --- batch tiling: choose step count first so padding is at most a few rows.
    n_steps = max(1, _cdiv(B, int(max(batch_tile, 1))))
    # v7x has 2 TensorCores: force >=2 grid steps when there is enough batch,
    # so the "parallel" grid axis actually splits work (no-op on v5e/v6e).
    if B > 8 and n_steps < 2:
        n_steps = 2
    TB = _round_up(max(_cdiv(B, n_steps), 1), 8)     # TB % 8 == 0 always
    B_pad = _round_up(B, TB)
    if B_pad != B:
        x_flat = jnp.pad(x_flat, ((0, B_pad - B), (0, 0)))
    grid_steps = B_pad // TB
    grid = (grid_steps,)

    if use_bf16:
        # bf16 operands, f32 accumulation (preferred_element_type stays f32).
        x_flat = x_flat.astype(jnp.bfloat16)
        w1 = w1.astype(jnp.bfloat16)
        w2 = w2.astype(jnp.bfloat16)
        w3 = w3.astype(jnp.bfloat16)

    n_buf_in = max(2, min(int(input_buffers), grid_steps))
    n_buf_out = 2

    vmem = pltpu.MemorySpace.VMEM
    act_spec = pl.BlockSpec((TB, d_in), lambda i: (i, 0), memory_space=vmem,
                            pipeline_mode=pl.Buffered(n_buf_in))
    out_spec = pl.BlockSpec((TB, d_out), lambda i: (i, 0), memory_space=vmem)

    def resident(arr):
        # Full-array block, constant index -> one DMA, stays in VMEM all steps.
        return pl.BlockSpec(arr.shape, lambda i: (0, 0), memory_space=vmem)

    args = (x_flat, w1, b1, w2, b2, w3, b3)

    in_elt = 2 if use_bf16 else 4
    weight_bytes = sum(int(np.prod(a.shape)) * a.dtype.itemsize for a in args[1:])
    vmem_limit = (n_buf_in * TB * d_in * in_elt
                  + n_buf_out * TB * d_out * 4
                  + weight_bytes
                  + (4 << 20))                       # compiler scratch headroom
    vmem_limit = int(min(vmem_limit, 64 << 20))

    out = pl.pallas_call(
        _mlp_kernel,
        out_shape=jax.ShapeDtypeStruct((B_pad, d_out), jnp.float32),
        grid=grid,
        in_specs=[act_spec] + [resident(a) for a in args[1:]],
        out_specs=out_spec,
        compiler_params=pltpu.CompilerParams(
            dimension_semantics=("parallel",),       # v7x: shard batch steps over 2 TCs
            vmem_limit_bytes=vmem_limit),
    )(*args)

    if B_pad != B:
        out = out[:B]
    return out.reshape(B, *output_shape)


def init_params(key, d_in, hidden_dims, d_out):
    """Deterministic synthetic init mimicking nn.Linear (uniform +-1/sqrt(fan_in))."""
    dims = [d_in] + list(hidden_dims) + [d_out]
    params = {}
    names = ["1", "2", "3"]
    for i, name in enumerate(names):
        fan_in, fan_out = dims[i], dims[i + 1]
        key, kw, kb = jax.random.split(key, 3)
        bound = 1.0 / np.sqrt(fan_in)
        # store as [in, out] so kernel does x @ W
        params["w" + name] = jax.random.uniform(
            kw, (fan_in, fan_out), jnp.float32, -bound, bound)
        params["b" + name] = jax.random.uniform(
            kb, (1, fan_out), jnp.float32, -bound, bound)
    return params


def reference_forward(x, params, output_shape):
    B = x.shape[0]
    h = x.reshape(B, -1)
    h = jnp.maximum(h @ params["w1"] + params["b1"], 0.0)
    h = jnp.maximum(h @ params["w2"] + params["b2"], 0.0)
    h = h @ params["w3"] + params["b3"]
    return h.reshape(B, *output_shape)


if __name__ == "__main__":
    # Module config (small, consistent with LowDimCore):
    input_shape = (4, 16)      # prod = 64
    output_shape = (2, 8)      # prod = 16
    hidden_dims = [32, 32]
    B = 2

    key = jax.random.PRNGKey(0)
    key, kx = jax.random.split(key)
    x = jax.random.normal(kx, (B,) + input_shape, jnp.float32)

    params = init_params(key, int(np.prod(input_shape)), hidden_dims,
                         int(np.prod(output_shape)))

    out = low_dim_core_forward(x, params, output_shape)
    out = jax.block_until_ready(out)

    ref = reference_forward(x, params, output_shape)
    np.testing.assert_allclose(np.asarray(out), np.asarray(ref),
                               rtol=1e-5, atol=1e-5)
    assert out.shape == (B,) + output_shape

    print("KERNEL_OK")
</pallas_src>

<mosaic_0001>
module attributes {stable_mosaic.version = 11 : i64} {
  func.func @_mlp_kernel(%arg0: i32, %arg1: memref<8x64xf32, #tpu.memory_space<vmem>>, %arg2: memref<64x128xf32, #tpu.memory_space<vmem>>, %arg3: memref<1x128xf32, #tpu.memory_space<vmem>>, %arg4: memref<128x128xf32, #tpu.memory_space<vmem>>, %arg5: memref<1x128xf32, #tpu.memory_space<vmem>>, %arg6: memref<128x16xf32, #tpu.memory_space<vmem>>, %arg7: memref<1x16xf32, #tpu.memory_space<vmem>>, %arg8: memref<8x16xf32, #tpu.memory_space<vmem>>) attributes {dimension_semantics = [#tpu.dimension_semantics<parallel>], iteration_bounds = array<i64: 1>, scalar_prefetch = 0 : i64, scratch_operands = 0 : i64, tpu.core_type = #tpu.core_type<tc>, window_params = [{pipeline_mode = #tpu.pipeline_mode<double_buffered>, transform_indices = @transform_0, window_bounds = array<i64: 8, 64>}, {pipeline_mode = #tpu.pipeline_mode<synchronous>, transform_indices = @transform_1, window_bounds = array<i64: 64, 128>}, {pipeline_mode = #tpu.pipeline_mode<synchronous>, transform_indices = @transform_2, window_bounds = array<i64: 1, 128>}, {pipeline_mode = #tpu.pipeline_mode<synchronous>, transform_indices = @transform_3, window_bounds = array<i64: 128, 128>}, {pipeline_mode = #tpu.pipeline_mode<synchronous>, transform_indices = @transform_4, window_bounds = array<i64: 1, 128>}, {pipeline_mode = #tpu.pipeline_mode<synchronous>, transform_indices = @transform_5, window_bounds = array<i64: 128, 16>}, {pipeline_mode = #tpu.pipeline_mode<synchronous>, transform_indices = @transform_6, window_bounds = array<i64: 1, 16>}, {transform_indices = @transform_7, window_bounds = array<i64: 8, 16>}]} {
    %c0 = arith.constant 0 : index
    %c0_0 = arith.constant 0 : index
    %0 = vector.load %arg1[%c0, %c0_0] : memref<8x64xf32, #tpu.memory_space<vmem>>, vector<8x64xf32>
    %c0_1 = arith.constant 0 : index
    %c0_2 = arith.constant 0 : index
    %1 = vector.load %arg2[%c0_1, %c0_2] : memref<64x128xf32, #tpu.memory_space<vmem>>, vector<64x128xf32>
    %cst = arith.constant dense<0.000000e+00> : vector<8x128xf32>
    %2 = tpu.matmul %0, %1, %cst {dimension_numbers = #tpu.dot_dimension_numbers<[1], [0], [0], [1], [0, 0, 1, 1], [], []>} : vector<8x64xf32>, vector<64x128xf32>, vector<8x128xf32> -> vector<8x128xf32>
    %c0_3 = arith.constant 0 : index
    %c0_4 = arith.constant 0 : index
    %3 = vector.load %arg3[%c0_3, %c0_4] : memref<1x128xf32, #tpu.memory_space<vmem>>, vector<1x128xf32>
    %4 = vector.broadcast %3 : vector<1x128xf32> to vector<8x128xf32>
    %5 = arith.addf %2, %4 : vector<8x128xf32>
    %cst_5 = arith.constant 0.000000e+00 : f32
    %6 = vector.broadcast %cst_5 : f32 to vector<8x128xf32>
    %7 = arith.maximumf %5, %6 : vector<8x128xf32>
    %c0_6 = arith.constant 0 : index
    %c0_7 = arith.constant 0 : index
    %8 = vector.load %arg4[%c0_6, %c0_7] : memref<128x128xf32, #tpu.memory_space<vmem>>, vector<128x128xf32>
    %cst_8 = arith.constant dense<0.000000e+00> : vector<8x128xf32>
    %9 = tpu.matmul %7, %8, %cst_8 {dimension_numbers = #tpu.dot_dimension_numbers<[1], [0], [0], [1], [0, 0, 1, 1], [], []>} : vector<8x128xf32>, vector<128x128xf32>, vector<8x128xf32> -> vector<8x128xf32>
    %c0_9 = arith.constant 0 : index
    %c0_10 = arith.constant 0 : index
    %10 = vector.load %arg5[%c0_9, %c0_10] : memref<1x128xf32, #tpu.memory_space<vmem>>, vector<1x128xf32>
    %11 = vector.broadcast %10 : vector<1x128xf32> to vector<8x128xf32>
    %12 = arith.addf %9, %11 : vector<8x128xf32>
    %cst_11 = arith.constant 0.000000e+00 : f32
    %13 = vector.broadcast %cst_11 : f32 to vector<8x128xf32>
    %14 = arith.maximumf %12, %13 : vector<8x128xf32>
    %c0_12 = arith.constant 0 : index
    %c0_13 = arith.constant 0 : index
    %15 = vector.load %arg6[%c0_12, %c0_13] : memref<128x16xf32, #tpu.memory_space<vmem>>, vector<128x16xf32>
    %cst_14 = arith.constant dense<0.000000e+00> : vector<8x16xf32>
    %16 = tpu.matmul %14, %15, %cst_14 {dimension_numbers = #tpu.dot_dimension_numbers<[1], [0], [0], [1], [0, 0, 1, 1], [], []>} : vector<8x128xf32>, vector<128x16xf32>, vector<8x16xf32> -> vector<8x16xf32>
    %c0_15 = arith.constant 0 : index
    %c0_16 = arith.constant 0 : index
    %17 = vector.load %arg7[%c0_15, %c0_16] : memref<1x16xf32, #tpu.memory_space<vmem>>, vector<1x16xf32>
    %18 = vector.broadcast %17 : vector<1x16xf32> to vector<8x16xf32>
    %19 = arith.addf %16, %18 : vector<8x16xf32>
    %c0_17 = arith.constant 0 : index
    %c0_18 = arith.constant 0 : index
    %20 = vector.load %arg8[%c0_17, %c0_18] : memref<8x16xf32, #tpu.memory_space<vmem>>, vector<8x16xf32>
    tpu.vector_store %arg8[%c0_17, %c0_18], %19 {strides = array<i32>} : memref<8x16xf32, #tpu.memory_space<vmem>>, vector<8x16xf32>,
    return
  }
  func.func @transform_0(%arg0: i32) -> (i32, i32) {
    %c0_i32 = arith.constant 0 : i32
    %c0_i32_0 = arith.constant 0 : i32
    return %arg0, %c0_i32 : i32, i32
  }
  func.func @transform_1(%arg0: i32) -> (i32, i32) {
    %c0_i32 = arith.constant 0 : i32
    %c0_i32_0 = arith.constant 0 : i32
    %c0_i32_1 = arith.constant 0 : i32
    return %c0_i32, %c0_i32_0 : i32, i32
  }
  func.func @transform_2(%arg0: i32) -> (i32, i32) {
    %c0_i32 = arith.constant 0 : i32
    %c0_i32_0 = arith.constant 0 : i32
    %c0_i32_1 = arith.constant 0 : i32
    return %c0_i32, %c0_i32_0 : i32, i32
  }
  func.func @transform_3(%arg0: i32) -> (i32, i32) {
    %c0_i32 = arith.constant 0 : i32
    %c0_i32_0 = arith.constant 0 : i32
    %c0_i32_1 = arith.constant 0 : i32
    return %c0_i32, %c0_i32_0 : i32, i32
  }
  func.func @transform_4(%arg0: i32) -> (i32, i32) {
    %c0_i32 = arith.constant 0 : i32
    %c0_i32_0 = arith.constant 0 : i32
    %c0_i32_1 = arith.constant 0 : i32
    return %c0_i32, %c0_i32_0 : i32, i32
  }
  func.func @transform_5(%arg0: i32) -> (i32, i32) {
    %c0_i32 = arith.constant 0 : i32
    %c0_i32_0 = arith.constant 0 : i32
    %c0_i32_1 = arith.constant 0 : i32
    return %c0_i32, %c0_i32_0 : i32, i32
  }
  func.func @transform_6(%arg0: i32) -> (i32, i32) {
    %c0_i32 = arith.constant 0 : i32
    %c0_i32_0 = arith.constant 0 : i32
    %c0_i32_1 = arith.constant 0 : i32
    return %c0_i32, %c0_i32_0 : i32, i32
  }
  func.func @transform_7(%arg0: i32) -> (i32, i32) {
    %c0_i32 = arith.constant 0 : i32
    %c0_i32_0 = arith.constant 0 : i32
    return %arg0, %c0_i32 : i32, i32
  }
}

</mosaic_0001>

<llo_original>
// kernel: tpu_custom_call.1
$region0: #{tpu_custom_call.1}
  #allocation0 [shape = 'u32[]', space=smem, size = 0x4, offset = 0x4, fixed_abs, tag = 'smem constant byte address 0x4 - core index']
  #allocation1 [shape = 'u32[144,128]{1,0:T(1,128)}', space=vmem, size = 0x12000, scoped, tag = 'internal scratch']
  %s0 = inlined_call_operand.vmem [shape: f32[8,64], index: 0, kind: input, shape index: {}]
  %s1 = inlined_call_operand.hbm [shape: f32[64,128], index: 1, kind: input, shape index: {}]
  %s2 = inlined_call_operand.vmem [shape: f32[1,128], index: 2, kind: input, shape index: {}]
  %s3 = inlined_call_operand.vmem [shape: f32[128,128], index: 3, kind: input, shape index: {}]
  %s4 = inlined_call_operand.vmem [shape: f32[1,128], index: 4, kind: input, shape index: {}]
  %s5 = inlined_call_operand.vmem [shape: f32[128,16], index: 5, kind: input, shape index: {}]
  %s6 = inlined_call_operand.vmem [shape: f32[1,16], index: 6, kind: input, shape index: {}]
  %s7 = inlined_call_operand.hbm [shape: f32[8,16], index: 7, kind: output, shape index: {}]
  %s8 = sld [smem:[#allocation0]]
  $region42: #{tpu_custom_call.1} parent=0
    _
  %s10 = ssub.s32 1, %s8
  %s11 = scalar_select 0, %s10, %s8
  $region1: #{tpu_custom_call.1} parent=0
    #allocation2 [shape = 'u8[32768]{0}', space=vmem, size = 0x8000, scoped, tag = 'input window, operand 1, single buffered']
    #allocation3 [shape = 's32[1]{0}', space=sflag, size = 0x4, scoped, tag = 'scoped memory for tpu_custom_call.1']
    #allocation4 [shape = 's32[1]{0}', space=sflag, size = 0x4, scoped, tag = 'scoped memory for tpu_custom_call.1']
    #allocation5 [shape = 'u8[4096]{0}', space=vmem, size = 0x1000, scoped, tag = 'output window, operand 0, single buffered']
    %12 = vsyncpa [#allocation3], 0
    %13 = vsyncpa [#allocation4], 0
    // Predicated region
    $region2: #{tpu_custom_call.1} parent=1 // pred_check
      _
    $region3: #{tpu_custom_call.1} parent=1 // pred_check_branch
      %15 = sbr.rel (0) target = $region5
    $region4: #{tpu_custom_call.1} parent=1 // pred_region
      _
    $region5: #{tpu_custom_call.1} parent=1 // pred_fallthru
      _
    // Predicated region
    $region6: #{tpu_custom_call.1} parent=1 // pred_check
      _
    $region7: #{tpu_custom_call.1} parent=1 // pred_check_branch
      %17 = sbr.rel (0) target = $region9
    $region8: #{tpu_custom_call.1} parent=1 // pred_region
      %s19 = ssub.s32 1024, 1024
      %20 = vsyncadd [#allocation3], %s19
      %s21 = sshll.u32 [#allocation2], 4
      %s22 = int_to_ptr.vmem [resolvable:$true] %s21
      %27 = dma.hbm_to_vmem [thread:$0]  %s1, 1024, %s22, [#allocation3], 128, 128, 8
    $region9: #{tpu_custom_call.1} parent=1 // pred_fallthru
      _
    // Predicated region
    $region10: #{tpu_custom_call.1} parent=1 // pred_check
      _
    $region11: #{tpu_custom_call.1} parent=1 // pred_check_branch
      %29 = sbr.rel (0) target = $region13
    $region12: #{tpu_custom_call.1} parent=1 // pred_region
      _
    $region13: #{tpu_custom_call.1} parent=1 // pred_fallthru
      _
    // Predicated region
    $region14: #{tpu_custom_call.1} parent=1 // pred_check
      _
    $region15: #{tpu_custom_call.1} parent=1 // pred_check_branch
      %31 = sbr.rel (0) target = $region17
    $region16: #{tpu_custom_call.1} parent=1 // pred_region
      _
    $region17: #{tpu_custom_call.1} parent=1 // pred_fallthru
      _
    // Predicated region
    $region18: #{tpu_custom_call.1} parent=1 // pred_check
      _
    $region19: #{tpu_custom_call.1} parent=1 // pred_check_branch
      %33 = sbr.rel (0) target = $region21
    $region20: #{tpu_custom_call.1} parent=1 // pred_region
      _
    $region21: #{tpu_custom_call.1} parent=1 // pred_fallthru
      _
    // Predicated region
    $region22: #{tpu_custom_call.1} parent=1 // pred_check
      _
    $region23: #{tpu_custom_call.1} parent=1 // pred_check_branch
      %35 = sbr.rel (0) target = $region25
    $region24: #{tpu_custom_call.1} parent=1 // pred_region
      _
    $region25: #{tpu_custom_call.1} parent=1 // pred_fallthru
      _
    // Predicated region
    $region26: #{tpu_custom_call.1} parent=1 // pred_check
      _
    $region27: #{tpu_custom_call.1} parent=1 // pred_check_branch
      %37 = sbr.rel (0) target = $region29
    $region28: #{tpu_custom_call.1} parent=1 // pred_region
      _
    $region29: #{tpu_custom_call.1} parent=1 // pred_fallthru
      _
    // Predicated region
    $region30: #{tpu_custom_call.1} parent=1 // pred_check
      _
    $region31: #{tpu_custom_call.1} parent=1 // pred_check_branch
      %39 = sbr.rel (0) target = $region33
    $region32: #{tpu_custom_call.1} parent=1 // pred_region
      %40 = dma.done [#allocation3], 1024
    $region33: #{tpu_custom_call.1} parent=1 // pred_fallthru
      _
    %v41 = vld [vmem:[%s0] sm:$0xff]
    %v42 = vld [vmem:[#allocation2] sm:$0xff]
    %v43 = vld [vmem:[#allocation2 + $0x8] sm:$0xff]
    %v44 = vld [vmem:[#allocation2 + $0x10] sm:$0xff]
    %v45 = vld [vmem:[#allocation2 + $0x18] sm:$0xff]
    %v46 = vld [vmem:[#allocation2 + $0x20] sm:$0xff]
    %v47 = vld [vmem:[#allocation2 + $0x28] sm:$0xff]
    %v48 = vld [vmem:[#allocation2 + $0x30] sm:$0xff]
    %v49 = vld [vmem:[#allocation2 + $0x38] sm:$0xff]
    %v50 = vld [vmem:[%s2] sm:$0x1]
    %v52 = vlaneseq
    %v53 = vshrl.u32 %v52, 7
    %v54 = vsub.s32 0, %v53
    %v55 = vrot.slane %v50, %v54
    %vm57 = vcmask 523264
    %v59 = vsel %vm57, %v41, 0
    %61 = vmatprep.subr.mxu0 0.0
    %62 = vmatpush1.msra.mxu0 %v42
    %63 = vmatprep.subr.mxu0 0.0
    %64 = vmatpush1.msra.mxu0 %v43
    %65 = vmatprep.subr.mxu0 0.0
    %66 = vmatpush1.msra.mxu0 %v44
    %67 = vmatprep.subr.mxu0 0.0
    %68 = vmatpush1.msra.mxu0 %v45
    %69 = vmatprep.subr.mxu0 0.0
    %70 = vmatpush1.msra.mxu0 %v46
    %71 = vmatprep.subr.mxu0 0.0
    %72 = vmatpush1.msra.mxu0 %v47
    %73 = vmatprep.subr.mxu0 0.0
    %74 = vmatpush1.msra.mxu0 %v48
    %75 = vmatprep.subr.mxu0 0.0
    %76 = vmatpush1.msra.mxu0 %v49
    %77 = vmatprep.subr.mxu0 0.0
    %78 = vmatpush1.msra.mxu0 0.0
    %79 = vmatprep.subr.mxu0 0.0
    %80 = vmatpush1.msra.mxu0 0.0
    %81 = vmatprep.subr.mxu0 0.0
    %82 = vmatpush1.msra.mxu0 0.0
    %83 = vmatprep.subr.mxu0 0.0
    %84 = vmatpush1.msra.mxu0 0.0
    %85 = vmatprep.subr.mxu0 0.0
    %86 = vmatpush1.msra.mxu0 0.0
    %87 = vmatprep.subr.mxu0 0.0
    %88 = vmatpush1.msra.mxu0 0.0
    %89 = vmatprep.subr.mxu0 0.0
    %90 = vmatpush1.msra.mxu0 0.0
    %91 = vmatprep.subr.mxu0 0.0
    %92 = vmatpush1.msra.mxu0 0.0
    %93 = vmatprep.subr.mxu0 0.0
    %94 = vmatpush1.msra.mxu0 0.0
    %95 = vmatprep.subr.mxu0 0.0
    %96 = vmatpush1.msra.mxu0 0.0
    %97 = vmatprep.subr.mxu0 0.0
    %98 = vmatpush1.msra.mxu0 0.0
    %99 = vmatprep.subr.mxu0 0.0
    %100 = vmatpush1.msra.mxu0 0.0
    %101 = vmatprep.subr.mxu0 0.0
    %102 = vmatpush1.msra.mxu0 0.0
    %103 = vmatprep.subr.mxu0 0.0
    %104 = vmatpush1.msra.mxu0 0.0
    %105 = vmatprep.subr.mxu0 0.0
    %106 = vmatpush1.msra.mxu0 0.0
    %107 = vmatprep.subr.mxu0 0.0
    %108 = vmatpush1.msra.mxu0 0.0
    %109 = vmatprep.subr.mxu0 0.0
    %110 = vmatpush1.msra.mxu0 0.0
    %111 = vmatprep.subr.mxu0 0.0
    %112 = vmatpush1.msra.mxu0 0.0
    %113 = vmatprep.subr.mxu0 0.0
    %114 = vmatpush1.msra.mxu0 0.0
    %115 = vmatprep.subr.mxu0 0.0
    %116 = vmatpush1.msra.mxu0 0.0
    %117 = vmatprep.subr.mxu0 0.0
    %118 = vmatpush1.msra.mxu0 0.0
    %119 = vmatprep.subr.mxu0 0.0
    %120 = vmatpush1.msra.mxu0 0.0
    %121 = vmatprep.subr.mxu0 0.0
    %122 = vmatpush1.msra.mxu0 0.0
    %123 = vmatprep.subr.mxu0 0.0
    %124 = vmatpush1.msra.mxu0 0.0
    %125 = vmatprep.mubr.f32.mxu0 0.0
    %126 = vmatmul.mubr.f32.gmra.mrb[0].mxu0 %v59
    %v127 = vpop.f32.mrb[0].mxu0
    %v128 = vadd.f32 %v55, %v127
    %v129 = vpop.f32.mrb[0].mxu0
    %130 = vdwg.mxu0
    %v131 = vmax.f32 %v128, 0.0
    %v132 = vld [vmem:[%s3] sm:$0xff]
    %v133 = vld [vmem:[%s3 + $0x8] sm:$0xff]
    %v134 = vld [vmem:[%s3 + $0x10] sm:$0xff]
    %v135 = vld [vmem:[%s3 + $0x18] sm:$0xff]
    %v136 = vld [vmem:[%s3 + $0x20] sm:$0xff]
    %v137 = vld [vmem:[%s3 + $0x28] sm:$0xff]
    %v138 = vld [vmem:[%s3 + $0x30] sm:$0xff]
    %v139 = vld [vmem:[%s3 + $0x38] sm:$0xff]
    %v140 = vld [vmem:[%s3 + $0x40] sm:$0xff]
    %v141 = vld [vmem:[%s3 + $0x48] sm:$0xff]
    %v142 = vld [vmem:[%s3 + $0x50] sm:$0xff]
    %v143 = vld [vmem:[%s3 + $0x58] sm:$0xff]
    %v144 = vld [vmem:[%s3 + $0x60] sm:$0xff]
    %v145 = vld [vmem:[%s3 + $0x68] sm:$0xff]
    %v146 = vld [vmem:[%s3 + $0x70] sm:$0xff]
    %v147 = vld [vmem:[%s3 + $0x78] sm:$0xff]
    %v148 = vld [vmem:[%s4] sm:$0x1]
    %v150 = vlaneseq
    %v151 = vshrl.u32 %v150, 7
    %v152 = vsub.s32 0, %v151
    %v153 = vrot.slane %v148, %v152
    %155 = vmatprep.subr.mxu0 0.0
    %156 = vmatpush1.msra.mxu0 %v132
    %157 = vmatprep.subr.mxu0 0.0
    %158 = vmatpush1.msra.mxu0 %v133
    %159 = vmatprep.subr.mxu0 0.0
    %160 = vmatpush1.msra.mxu0 %v134
    %161 = vmatprep.subr.mxu0 0.0
    %162 = vmatpush1.msra.mxu0 %v135
    %163 = vmatprep.subr.mxu0 0.0
    %164 = vmatpush1.msra.mxu0 %v136
    %165 = vmatprep.subr.mxu0 0.0
    %166 = vmatpush1.msra.mxu0 %v137
    %167 = vmatprep.subr.mxu0 0.0
    %168 = vmatpush1.msra.mxu0 %v138
    %169 = vmatprep.subr.mxu0 0.0
    %170 = vmatpush1.msra.mxu0 %v139
    %171 = vmatprep.subr.mxu0 0.0
    %172 = vmatpush1.msra.mxu0 %v140
    %173 = vmatprep.subr.mxu0 0.0
    %174 = vmatpush1.msra.mxu0 %v141
    %175 = vmatprep.subr.mxu0 0.0
    %176 = vmatpush1.msra.mxu0 %v142
    %177 = vmatprep.subr.mxu0 0.0
    %178 = vmatpush1.msra.mxu0 %v143
    %179 = vmatprep.subr.mxu0 0.0
    %180 = vmatpush1.msra.mxu0 %v144
    %181 = vmatprep.subr.mxu0 0.0
    %182 = vmatpush1.msra.mxu0 %v145
    %183 = vmatprep.subr.mxu0 0.0
    %184 = vmatpush1.msra.mxu0 %v146
    %185 = vmatprep.subr.mxu0 0.0
    %186 = vmatpush1.msra.mxu0 %v147
    %187 = vmatprep.subr.mxu0 0.0
    %188 = vmatpush1.msra.mxu0 0.0
    %189 = vmatprep.subr.mxu0 0.0
    %190 = vmatpush1.msra.mxu0 0.0
    %191 = vmatprep.subr.mxu0 0.0
    %192 = vmatpush1.msra.mxu0 0.0
    %193 = vmatprep.subr.mxu0 0.0
    %194 = vmatpush1.msra.mxu0 0.0
    %195 = vmatprep.subr.mxu0 0.0
    %196 = vmatpush1.msra.mxu0 0.0
    %197 = vmatprep.subr.mxu0 0.0
    %198 = vmatpush1.msra.mxu0 0.0
    %199 = vmatprep.subr.mxu0 0.0
    %200 = vmatpush1.msra.mxu0 0.0
    %201 = vmatprep.subr.mxu0 0.0
    %202 = vmatpush1.msra.mxu0 0.0
    %203 = vmatprep.subr.mxu0 0.0
    %204 = vmatpush1.msra.mxu0 0.0
    %205 = vmatprep.subr.mxu0 0.0
    %206 = vmatpush1.msra.mxu0 0.0
    %207 = vmatprep.subr.mxu0 0.0
    %208 = vmatpush1.msra.mxu0 0.0
    %209 = vmatprep.subr.mxu0 0.0
    %210 = vmatpush1.msra.mxu0 0.0
    %211 = vmatprep.subr.mxu0 0.0
    %212 = vmatpush1.msra.mxu0 0.0
    %213 = vmatprep.subr.mxu0 0.0
    %214 = vmatpush1.msra.mxu0 0.0
    %215 = vmatprep.subr.mxu0 0.0
    %216 = vmatpush1.msra.mxu0 0.0
    %217 = vmatprep.subr.mxu0 0.0
    %218 = vmatpush1.msra.mxu0 0.0
    %219 = vmatprep.mubr.f32.mxu0 0.0
    %220 = vmatmul.mubr.f32.gmra.mrb[0].mxu0 %v131
    %v221 = vpop.f32.mrb[0].mxu0
    %v222 = vadd.f32 %v153, %v221
    %v223 = vpop.f32.mrb[0].mxu0
    %224 = vdwg.mxu0
    %v225 = vmax.f32 %v222, 0.0
    %v226 = vld [vmem:[%s5] sm:$0xff]
    %v227 = vld [vmem:[%s5 + $0x8] sm:$0xff]
    %v228 = vld [vmem:[%s5 + $0x10] sm:$0xff]
    %v229 = vld [vmem:[%s5 + $0x18] sm:$0xff]
    %v230 = vld [vmem:[%s5 + $0x20] sm:$0xff]
    %v231 = vld [vmem:[%s5 + $0x28] sm:$0xff]
    %v232 = vld [vmem:[%s5 + $0x30] sm:$0xff]
    %v233 = vld [vmem:[%s5 + $0x38] sm:$0xff]
    %v234 = vld [vmem:[%s5 + $0x40] sm:$0xff]
    %v235 = vld [vmem:[%s5 + $0x48] sm:$0xff]
    %v236 = vld [vmem:[%s5 + $0x50] sm:$0xff]
    %v237 = vld [vmem:[%s5 + $0x58] sm:$0xff]
    %v238 = vld [vmem:[%s5 + $0x60] sm:$0xff]
    %v239 = vld [vmem:[%s5 + $0x68] sm:$0xff]
    %v240 = vld [vmem:[%s5 + $0x70] sm:$0xff]
    %v241 = vld [vmem:[%s5 + $0x78] sm:$0xff]
    %v242 = vld [vmem:[%s6] sm:$0x1]
    %v244 = vlaneseq
    %v245 = vshrl.u32 %v244, 7
    %v246 = vsub.s32 0, %v245
    %v247 = vrot.slane %v242, %v246
    %249 = vmatprep.subr.mxu0 0.0
    %250 = vmatpush1.msra.mxu0 %v226
    %251 = vmatprep.subr.mxu0 0.0
    %252 = vmatpush1.msra.mxu0 %v227
    %253 = vmatprep.subr.mxu0 0.0
    %254 = vmatpush1.msra.mxu0 %v228
    %255 = vmatprep.subr.mxu0 0.0
    %256 = vmatpush1.msra.mxu0 %v229
    %257 = vmatprep.subr.mxu0 0.0
    %258 = vmatpush1.msra.mxu0 %v230
    %259 = vmatprep.subr.mxu0 0.0
    %260 = vmatpush1.msra.mxu0 %v231
    %261 = vmatprep.subr.mxu0 0.0
    %262 = vmatpush1.msra.mxu0 %v232
    %263 = vmatprep.subr.mxu0 0.0
    %264 = vmatpush1.msra.mxu0 %v233
    %265 = vmatprep.subr.mxu0 0.0
    %266 = vmatpush1.msra.mxu0 %v234
    %267 = vmatprep.subr.mxu0 0.0
    %268 = vmatpush1.msra.mxu0 %v235
    %269 = vmatprep.subr.mxu0 0.0
    %270 = vmatpush1.msra.mxu0 %v236
    %271 = vmatprep.subr.mxu0 0.0
    %272 = vmatpush1.msra.mxu0 %v237
    %273 = vmatprep.subr.mxu0 0.0
    %274 = vmatpush1.msra.mxu0 %v238
    %275 = vmatprep.subr.mxu0 0.0
    %276 = vmatpush1.msra.mxu0 %v239
    %277 = vmatprep.subr.mxu0 0.0
    %278 = vmatpush1.msra.mxu0 %v240
    %279 = vmatprep.subr.mxu0 0.0
    %280 = vmatpush1.msra.mxu0 %v241
    %281 = vmatprep.subr.mxu0 0.0
    %282 = vmatpush1.msra.mxu0 0.0
    %283 = vmatprep.subr.mxu0 0.0
    %284 = vmatpush1.msra.mxu0 0.0
    %285 = vmatprep.subr.mxu0 0.0
    %286 = vmatpush1.msra.mxu0 0.0
    %287 = vmatprep.subr.mxu0 0.0
    %288 = vmatpush1.msra.mxu0 0.0
    %289 = vmatprep.subr.mxu0 0.0
    %290 = vmatpush1.msra.mxu0 0.0
    %291 = vmatprep.subr.mxu0 0.0
    %292 = vmatpush1.msra.mxu0 0.0
    %293 = vmatprep.subr.mxu0 0.0
    %294 = vmatpush1.msra.mxu0 0.0
    %295 = vmatprep.subr.mxu0 0.0
    %296 = vmatpush1.msra.mxu0 0.0
    %297 = vmatprep.subr.mxu0 0.0
    %298 = vmatpush1.msra.mxu0 0.0
    %299 = vmatprep.subr.mxu0 0.0
    %300 = vmatpush1.msra.mxu0 0.0
    %301 = vmatprep.subr.mxu0 0.0
    %302 = vmatpush1.msra.mxu0 0.0
    %303 = vmatprep.subr.mxu0 0.0
    %304 = vmatpush1.msra.mxu0 0.0
    %305 = vmatprep.subr.mxu0 0.0
    %306 = vmatpush1.msra.mxu0 0.0
    %307 = vmatprep.subr.mxu0 0.0
    %308 = vmatpush1.msra.mxu0 0.0
    %309 = vmatprep.subr.mxu0 0.0
    %310 = vmatpush1.msra.mxu0 0.0
    %311 = vmatprep.subr.mxu0 0.0
    %312 = vmatpush1.msra.mxu0 0.0
    %313 = vmatprep.mubr.f32.mxu0 0.0
    %314 = vmatmul.mubr.f32.gmra.mrb[0].mxu0 %v225
    %v315 = vpop.f32.mrb[0].mxu0
    %v316 = vadd.f32 %v247, %v315
    %v317 = vpop.f32.mrb[0].mxu0
    %318 = vdwg.mxu0
    %vm319 = vcmask 130048
    %320 = vst.msk [vmem:[#allocation5] sm:$0xff] %vm319, %v316
    // Predicated region
    $region34: #{tpu_custom_call.1} parent=1 // pred_check
      _
    $region35: #{tpu_custom_call.1} parent=1 // pred_check_branch
      %322 = sbr.rel (0) target = $region37
    $region36: #{tpu_custom_call.1} parent=1 // pred_region
      %s324 = ssub.s32 128, 128
      %325 = vsyncadd [#allocation4], %s324
      %s327 = sshll.u32 [#allocation5], 4
      %s328 = int_to_ptr.vmem [resolvable:$true] %s327
      %330 = dma.vmem_to_hbm [thread:$0]  %s328, 128, %s7, [#allocation4]
    $region37: #{tpu_custom_call.1} parent=1 // pred_fallthru
      _
    // Predicated region
    $region38: #{tpu_custom_call.1} parent=1 // pred_check
      _
    $region39: #{tpu_custom_call.1} parent=1 // pred_check_branch
      %332 = sbr.rel (0) target = $region41
    $region40: #{tpu_custom_call.1} parent=1 // pred_region
      %333 = dma.done [#allocation4], 128
    $region41: #{tpu_custom_call.1} parent=1 // pred_fallthru
      _
    %334 = vsyncpa [#allocation3], 1
    %335 = vsyncpa [#allocation4], 1

</llo_original>
